<compile_context>
chip_gen: v7x
topology: tpu7x:2x2x1
jax: 0.10.0
libtpu: 0.0.40
codegen_flags: <defaults>
</compile_context>

<pallas_src>
import functools

import jax
import jax.numpy as jnp
import numpy as np
from jax.experimental import pallas as pl
from jax.experimental.pallas import tpu as pltpu

_LANES = 128
_TARGET_BLOCK_BYTES = 6 * 1024 * 1024   # ~6 MiB x-blocks; 2*(in+out) ~= 24 MiB VMEM
_MAX_TB = 4096                           # bounds the (tb, 128)-padded scale tile


def _round_up(x, m):
    return ((x + m - 1) // m) * m


def _choose_tiles(b, n, itemsize):
    """Pick (tb, tn): tb samples x tn features per block, ~_TARGET_BLOCK_BYTES.

    Legality: tn is a multiple of 128; tb is a multiple of the dtype sublane
    quantum or equals the full batch dim.  Edge blocks may be partial.
    """
    q = max(8, 32 // itemsize)           # sublane quantum: 8 f32 / 16 bf16 / 32 int8
    n_lanes = _round_up(n, _LANES)

    tn = n_lanes
    tb_fit = _TARGET_BLOCK_BYTES // (tn * itemsize)
    if tb_fit >= b:
        tb = b                           # whole batch fits alongside full features
    elif tb_fit >= q:
        tb = (tb_fit // q) * q           # batch several samples per block
    else:
        # A single (padded) sample is wider than the target: tile the feature axis.
        tb = min(b, q)
        tn = _TARGET_BLOCK_BYTES // (tb * itemsize)
        tn = max(_LANES, (tn // _LANES) * _LANES)
        tn = min(tn, n_lanes)
    tb = min(tb, _MAX_TB)

    # v7x has 2 TensorCores sharing the grid: keep >= 2 grid steps when there is
    # a meaningful amount of work instead of collapsing to grid=(1, 1).
    total_bytes = b * n * itemsize
    if pl.cdiv(b, tb) * pl.cdiv(n, tn) == 1 and total_bytes >= (1 << 20):
        if b >= 2 * q:
            tb = _round_up(pl.cdiv(b, 2), q)
        elif n >= 2 * _LANES:
            tn = _round_up(pl.cdiv(n, 2), _LANES)
    return tb, tn


# ------------------------------ Pallas kernel ------------------------------ #

def _drop_path_kernel(scale_ref, x_ref, o_ref):
    """o[s, f] = x[s, f] * scale[s]; scale is a (tb, 1) f32 block, lane-broadcast."""
    o_ref[...] = (x_ref[...] * scale_ref[...]).astype(o_ref.dtype)


def _scaled_mask_apply(x, scale_f32, *, donate_x=False):
    """out[b, ...] = x[b, ...] * scale_f32[b] with exactly one HBM read + write."""
    orig_shape = x.shape
    b = orig_shape[0]
    n = int(np.prod(orig_shape[1:])) if len(orig_shape) > 1 else 1
    itemsize = np.dtype(x.dtype).itemsize

    x2 = x.reshape(b, n)                              # free reshape (contiguous view)
    scale2 = scale_f32.astype(jnp.float32).reshape(b, 1)

    tb, tn = _choose_tiles(b, n, itemsize)
    grid = (pl.cdiv(b, tb), pl.cdiv(n, tn))

    out = pl.pallas_call(
        _drop_path_kernel,
        out_shape=jax.ShapeDtypeStruct((b, n), x.dtype),
        grid_spec=pltpu.PrefetchScalarGridSpec(
            num_scalar_prefetch=0,
            grid=grid,
            in_specs=[
                # per-sample scales: (tb, 1) block, constant across the j axis
                pl.BlockSpec((tb, 1), lambda i, j: (i, 0)),
                # activations: (tb, tn) lane-dense blocks
                pl.BlockSpec((tb, tn), lambda i, j: (i, j)),
            ],
            out_specs=pl.BlockSpec((tb, tn), lambda i, j: (i, j)),
        ),
        compiler_params=pltpu.CompilerParams(
            dimension_semantics=("parallel", "parallel"),
            vmem_limit_bytes=32 * 1024 * 1024,
        ),
        # In-place when the caller donates x (saves the output allocation — most
        # useful on 16-GiB v5e).  Off by default: without donation XLA would
        # insert a protective copy of x, i.e. an extra HBM pass.
        input_output_aliases=({1: 0} if donate_x else {}),
    )(scale2, x2)

    return out.reshape(orig_shape)


# ------------------------------ public API --------------------------------- #

def drop_path(x, key, drop_prob=0.0, training=False, scale_by_keep=True,
              donate_x=False):
    """JAX/Pallas equivalent of models.common_blocks.drop_path."""
    if drop_prob == 0.0 or not training:
        return x
    keep_prob = 1.0 - drop_prob
    b = x.shape[0]
    mask = jax.random.bernoulli(key, p=keep_prob, shape=(b,)).astype(jnp.float32)
    if keep_prob > 0.0 and scale_by_keep:
        scale = mask / keep_prob
    else:
        scale = mask
    return _scaled_mask_apply(x, scale, donate_x=donate_x)


class DropPath:
    """Mirror of the PyTorch DropPath module (stateless; PRNG key passed at call)."""

    def __init__(self, drop_prob=None, scale_by_keep=True):
        self.drop_prob = drop_prob
        self.scale_by_keep = scale_by_keep
        self.training = True

    def __call__(self, x, key):
        p = 0.0 if self.drop_prob is None else float(self.drop_prob)
        return drop_path(x, key, p, self.training, self.scale_by_keep)


# ------------------------------- reference --------------------------------- #

def drop_path_reference(x, key, drop_prob, training, scale_by_keep=True):
    if drop_prob == 0.0 or not training:
        return x
    keep_prob = 1.0 - drop_prob
    b = x.shape[0]
    mask = jax.random.bernoulli(key, p=keep_prob, shape=(b,)).astype(jnp.float32)
    if keep_prob > 0.0 and scale_by_keep:
        mask = mask / keep_prob
    bshape = (b,) + (1,) * (x.ndim - 1)
    return (x.astype(jnp.float32) * mask.reshape(bshape)).astype(x.dtype)


# ----------------------------------- main ----------------------------------- #

if __name__ == "__main__":
    key = jax.random.PRNGKey(0)
    kx, kmask, kx2, kmask2, kx3, kmask3 = jax.random.split(key, 6)

    # 1) Training mode, drop_prob > 0, lane-aligned features (4*16*16 = 1024).
    B, C, H, W = 2, 4, 16, 16
    x = jax.random.normal(kx, (B, C, H, W), jnp.float32)
    drop_prob = 0.375

    mod = DropPath(drop_prob=drop_prob, scale_by_keep=True)
    mod.training = True
    out = jax.block_until_ready(mod(x, kmask))
    ref = drop_path_reference(x, kmask, drop_prob, True, True)
    assert out.shape == x.shape, out.shape
    np.testing.assert_allclose(np.asarray(out), np.asarray(ref), rtol=1e-6, atol=1e-6)

    # 2) Ragged feature count (3*15*7 = 315): partial lane blocks, no wrapper pad.
    x2 = jax.random.normal(kx2, (8, 3, 15, 7), jnp.float32)
    out2 = jax.block_until_ready(drop_path(x2, kmask2, 0.5, True, True))
    ref2 = drop_path_reference(x2, kmask2, 0.5, True, True)
    np.testing.assert_allclose(np.asarray(out2), np.asarray(ref2), rtol=1e-6, atol=1e-6)

    # 3) bf16 input + scale_by_keep=False path.
    x3 = jax.random.normal(kx3, (4, 8, 32), jnp.float32).astype(jnp.bfloat16)
    out3 = jax.block_until_ready(drop_path(x3, kmask3, 0.25, True, False))
    ref3 = drop_path_reference(x3, kmask3, 0.25, True, False)
    np.testing.assert_allclose(np.asarray(out3.astype(jnp.float32)),
                               np.asarray(ref3.astype(jnp.float32)),
                               rtol=1e-2, atol=1e-2)

    # 4) Donated / in-place aliased variant (input_output_aliases).
    x_copy = x + 0.0
    f_inplace = jax.jit(
        functools.partial(drop_path, drop_prob=drop_prob, training=True,
                          scale_by_keep=True, donate_x=True),
        donate_argnums=(0,))
    out4 = jax.block_until_ready(f_inplace(x_copy, kmask))
    np.testing.assert_allclose(np.asarray(out4), np.asarray(ref), rtol=1e-6, atol=1e-6)

    # 5) Eval mode / drop_prob == 0 are exact identities (no kernel launched).
    mod.training = False
    np.testing.assert_array_equal(np.asarray(mod(x, kmask)), np.asarray(x))
    np.testing.assert_array_equal(np.asarray(drop_path(x, kmask, 0.0, True)),
                                  np.asarray(x))

    print("KERNEL_OK")
</pallas_src>

<mosaic_0001>
module attributes {stable_mosaic.version = 11 : i64} {
  func.func @_drop_path_kernel(%arg0: i32, %arg1: i32, %arg2: memref<2x1xf32, #tpu.memory_space<vmem>>, %arg3: memref<2x1024xf32, #tpu.memory_space<vmem>>, %arg4: memref<2x1024xf32, #tpu.memory_space<vmem>>) attributes {dimension_semantics = [#tpu.dimension_semantics<parallel>, #tpu.dimension_semantics<parallel>], iteration_bounds = array<i64: 1, 1>, scalar_prefetch = 0 : i64, scratch_operands = 0 : i64, tpu.core_type = #tpu.core_type<tc>, window_params = [{transform_indices = @transform_0, window_bounds = array<i64: 2, 1>}, {transform_indices = @transform_1, window_bounds = array<i64: 2, 1024>}, {transform_indices = @transform_2, window_bounds = array<i64: 2, 1024>}]} {
    %c0 = arith.constant 0 : index
    %c0_0 = arith.constant 0 : index
    %0 = vector.load %arg3[%c0, %c0_0] : memref<2x1024xf32, #tpu.memory_space<vmem>>, vector<2x1024xf32>
    %c0_1 = arith.constant 0 : index
    %c0_2 = arith.constant 0 : index
    %1 = vector.load %arg2[%c0_1, %c0_2] : memref<2x1xf32, #tpu.memory_space<vmem>>, vector<2x1xf32>
    %2 = vector.broadcast %1 : vector<2x1xf32> to vector<2x1024xf32>
    %3 = arith.mulf %0, %2 : vector<2x1024xf32>
    %c0_3 = arith.constant 0 : index
    %c0_4 = arith.constant 0 : index
    %4 = vector.load %arg4[%c0_3, %c0_4] : memref<2x1024xf32, #tpu.memory_space<vmem>>, vector<2x1024xf32>
    tpu.vector_store %arg4[%c0_3, %c0_4], %3 {strides = array<i32>} : memref<2x1024xf32, #tpu.memory_space<vmem>>, vector<2x1024xf32>,
    return
  }
  func.func @transform_0(%arg0: i32, %arg1: i32) -> (i32, i32) {
    %c0_i32 = arith.constant 0 : i32
    %c0_i32_0 = arith.constant 0 : i32
    return %arg0, %c0_i32 : i32, i32
  }
  func.func @transform_1(%arg0: i32, %arg1: i32) -> (i32, i32) {
    %c0_i32 = arith.constant 0 : i32
    return %arg0, %arg1 : i32, i32
  }
  func.func @transform_2(%arg0: i32, %arg1: i32) -> (i32, i32) {
    %c0_i32 = arith.constant 0 : i32
    return %arg0, %arg1 : i32, i32
  }
}

</mosaic_0001>

<llo_original>
// kernel: tpu_custom_call.1
$region0: #{tpu_custom_call.1}
  #allocation0 [shape = 'u32[]', space=smem, size = 0x4, offset = 0x4, fixed_abs, tag = 'smem constant byte address 0x4 - core index']
  #allocation1 [shape = 'u32[144,128]{1,0:T(1,128)}', space=vmem, size = 0x12000, scoped, tag = 'internal scratch']
  %s0 = inlined_call_operand.vmem [shape: f32[2,1], index: 0, kind: input, shape index: {}]
  %s1 = inlined_call_operand.hbm [shape: f32[2,1024], index: 1, kind: input, shape index: {}]
  %s2 = inlined_call_operand.hbm [shape: f32[2,1024], index: 2, kind: output, shape index: {}]
  %s3 = sld [smem:[#allocation0]]
  $region22: #{tpu_custom_call.1} parent=0
    _
  %s5 = ssub.s32 1, %s3
  %s6 = scalar_select 0, %s5, %s3
  $region1: #{tpu_custom_call.1} parent=0
    #allocation2 [shape = 'u8[8192]{0}', space=vmem, size = 0x2000, scoped, tag = 'input window, operand 1, single buffered']
    #allocation3 [shape = 's32[1]{0}', space=sflag, size = 0x4, scoped, tag = 'scoped memory for tpu_custom_call.1']
    #allocation4 [shape = 's32[1]{0}', space=sflag, size = 0x4, scoped, tag = 'scoped memory for tpu_custom_call.1']
    #allocation5 [shape = 'u8[8192]{0}', space=vmem, size = 0x2000, scoped, tag = 'output window, operand 0, single buffered']
    %7 = vsyncpa [#allocation3], 0
    %8 = vsyncpa [#allocation4], 0
    // Predicated region
    $region2: #{tpu_custom_call.1} parent=1 // pred_check
      _
    $region3: #{tpu_custom_call.1} parent=1 // pred_check_branch
      %10 = sbr.rel (0) target = $region5
    $region4: #{tpu_custom_call.1} parent=1 // pred_region
      _
    $region5: #{tpu_custom_call.1} parent=1 // pred_fallthru
      _
    // Predicated region
    $region6: #{tpu_custom_call.1} parent=1 // pred_check
      _
    $region7: #{tpu_custom_call.1} parent=1 // pred_check_branch
      %12 = sbr.rel (0) target = $region9
    $region8: #{tpu_custom_call.1} parent=1 // pred_region
      %s14 = ssub.s32 256, 256
      %15 = vsyncadd [#allocation3], %s14
      %s17 = sshll.u32 [#allocation2], 4
      %s18 = int_to_ptr.vmem [resolvable:$true] %s17
      %20 = dma.hbm_to_vmem [thread:$0]  %s1, 256, %s18, [#allocation3]
    $region9: #{tpu_custom_call.1} parent=1 // pred_fallthru
      _
    // Predicated region
    $region10: #{tpu_custom_call.1} parent=1 // pred_check
      _
    $region11: #{tpu_custom_call.1} parent=1 // pred_check_branch
      %22 = sbr.rel (0) target = $region13
    $region12: #{tpu_custom_call.1} parent=1 // pred_region
      %23 = dma.done [#allocation3], 256
    $region13: #{tpu_custom_call.1} parent=1 // pred_fallthru
      _
    %v24 = vld [vmem:[#allocation2] sm:$0xff]
    %v25 = vld [vmem:[#allocation2 + $0x8] sm:$0xff]
    %v26 = vld [vmem:[%s0] sm:$0x3]
    %28 = vset.pattern.permute.xlu0 0
    %29 = vperm.xlu0 %28, %v26
    %v30 = vpop.permute.xlu0 %29
    %v32 = vunpack.c.l.s4 269488144
    %v33 = vunpack.c.0.s8 %v32
    %v34 = vlaneseq
    %v35 = vshrl.u32 %v34, 7
    %v36 = vsub.s32 %v33, %v35
    %v37 = vrot.slane %v30, %v36
    %v39 = vmul.f32 %v24, %v37
    %v40 = vmul.f32 %v25, %v37
    %41 = vst [vmem:[#allocation5] sm:$0xff] %v39
    %42 = vst [vmem:[#allocation5 + $0x8] sm:$0xff] %v40
    // Predicated region
    $region14: #{tpu_custom_call.1} parent=1 // pred_check
      _
    $region15: #{tpu_custom_call.1} parent=1 // pred_check_branch
      %44 = sbr.rel (0) target = $region17
    $region16: #{tpu_custom_call.1} parent=1 // pred_region
      %s46 = ssub.s32 256, 256
      %47 = vsyncadd [#allocation4], %s46
      %s49 = sshll.u32 [#allocation5], 4
      %s50 = int_to_ptr.vmem [resolvable:$true] %s49
      %52 = dma.vmem_to_hbm [thread:$0]  %s50, 256, %s2, [#allocation4]
    $region17: #{tpu_custom_call.1} parent=1 // pred_fallthru
      _
    // Predicated region
    $region18: #{tpu_custom_call.1} parent=1 // pred_check
      _
    $region19: #{tpu_custom_call.1} parent=1 // pred_check_branch
      %54 = sbr.rel (0) target = $region21
    $region20: #{tpu_custom_call.1} parent=1 // pred_region
      %55 = dma.done [#allocation4], 256
    $region21: #{tpu_custom_call.1} parent=1 // pred_fallthru
      _
    %56 = vsyncpa [#allocation3], 1
    %57 = vsyncpa [#allocation4], 1

</llo_original>
